<compile_context>
chip_gen: v7x
topology: tpu7x:2x2x1
jax: 0.10.0
libtpu: 0.0.40
codegen_flags: <defaults>
</compile_context>

<pallas_src>
import jax
import jax.numpy as jnp
from jax import lax
from jax.experimental import pallas as pl
from jax.experimental.pallas import tpu as pltpu

B, F = 8, 10  # batch, features (nn.Linear(10, 10))


def nested_cf_kernel(s_ref, x_ref, w_ref, b_ref, o_ref):
    # s_ref: (2,) int32 in SMEM -> [branch_is_positive, n_iter]
    x = x_ref[...]                      # (B, F) f32

    # Unconditional default write: negation branch. Also covers the NaN-sum
    # case (predicate false) so o_ref is never left unwritten.
    o_ref[...] = -x

    pos = s_ref[0]
    n_iter = s_ref[1]

    @pl.when(pos == 1)
    def _():
        w = w_ref[...]                                     # (F, F) f32, (out, in)
        bb = jnp.broadcast_to(b_ref[...], (B, F))          # hoisted out of loop

        def body(_, xc):
            # x @ W^T via contraction on weight's second (in) axis; no
            # materialized transpose.
            y = lax.dot_general(
                xc, w,
                dimension_numbers=(((1,), (1,)), ((), ())),
                preferred_element_type=jnp.float32,
            )
            return y + bb

        o_ref[...] = lax.fori_loop(0, n_iter, body, x)


def nested_control_flow(x, weight, bias):
    """x: (B, F); weight: (F, F) as in nn.Linear (out, in); bias: (F,)."""
    # Scalar control values computed once on the host/XLA side and handed to
    # the kernel through SMEM (keeps the kernel's scalar path off the VPU/XLU).
    total = jnp.sum(x)
    pos = (total > 0).astype(jnp.int32)
    # int(x[0,0].item()) truncates toward zero; range(n) with n <= 0 is empty.
    n_iter = jnp.maximum(x[0, 0].astype(jnp.int32), jnp.int32(0))
    scalars = jnp.stack([pos, n_iter]).astype(jnp.int32)   # (2,) int32

    b2 = bias.reshape(1, F)             # keep 2-D for TPU layout

    return pl.pallas_call(
        nested_cf_kernel,
        out_shape=jax.ShapeDtypeStruct((B, F), jnp.float32),
        in_specs=[
            pl.BlockSpec(memory_space=pltpu.MemorySpace.SMEM),  # scalars
            pl.BlockSpec((B, F), lambda: (0, 0)),               # x
            pl.BlockSpec((F, F), lambda: (0, 0)),               # weight (out,in)
            pl.BlockSpec((1, F), lambda: (0, 0)),               # bias
        ],
        out_specs=pl.BlockSpec((B, F), lambda: (0, 0)),
    )(scalars, x, weight, b2)


def reference(x, weight, bias):
    # Pure-JAX reference mirroring the PyTorch semantics (Python-level control
    # flow, since values are concrete here).
    if float(jnp.sum(x)) > 0:
        y = x
        for _ in range(max(int(x[0, 0]), 0)):
            y = y @ weight.T + bias
        return y
    return -x


if __name__ == "__main__":
    key = jax.random.PRNGKey(0)
    kx, kw, kb = jax.random.split(key, 3)

    # Deterministic parameter init (shapes from nn.Linear(10, 10)).
    bound = 1.0 / jnp.sqrt(F)
    weight = jax.random.uniform(kw, (F, F), jnp.float32, -bound, bound)
    bias = jax.random.uniform(kb, (F,), jnp.float32, -bound, bound)

    # Deterministic input: positive sum, x[0,0] = 3 -> loop runs 3 times.
    x = jax.random.normal(kx, (B, F), jnp.float32) * 0.1 + 0.2
    x = x.at[0, 0].set(3.0)

    out = nested_control_flow(x, weight, bias)
    out = jax.block_until_ready(out)

    ref = reference(x, weight, bias)
    assert jnp.allclose(out, ref, atol=1e-5, rtol=1e-5), "mismatch vs reference"

    # Also exercise the negation branch.
    x_neg = -jnp.abs(jax.random.normal(kx, (B, F), jnp.float32)) - 0.1
    out_neg = jax.block_until_ready(nested_control_flow(x_neg, weight, bias))
    assert jnp.allclose(out_neg, -x_neg, atol=1e-6), "negation branch mismatch"

    # Zero-iteration positive branch (x[0,0] truncates to 0 -> identity).
    x_zero = jnp.abs(jax.random.normal(kb, (B, F), jnp.float32)) * 0.1
    x_zero = x_zero.at[0, 0].set(0.7)
    out_zero = jax.block_until_ready(nested_control_flow(x_zero, weight, bias))
    assert jnp.allclose(out_zero, reference(x_zero, weight, bias),
                        atol=1e-6), "zero-iteration branch mismatch"

    print("KERNEL_OK")
</pallas_src>

<mosaic_0001>
module attributes {stable_mosaic.version = 11 : i64} {
  func.func @nested_cf_kernel(%arg0: memref<2xi32, #tpu.memory_space<smem>>, %arg1: memref<8x10xf32, #tpu.memory_space<vmem>>, %arg2: memref<10x10xf32, #tpu.memory_space<vmem>>, %arg3: memref<1x10xf32, #tpu.memory_space<vmem>>, %arg4: memref<8x10xf32, #tpu.memory_space<vmem>>) attributes {dimension_semantics = [], scalar_prefetch = 0 : i64, scratch_operands = 0 : i64, tpu.core_type = #tpu.core_type<tc>} {
    %c0 = arith.constant 0 : index
    %c0_0 = arith.constant 0 : index
    %0 = vector.load %arg1[%c0, %c0_0] : memref<8x10xf32, #tpu.memory_space<vmem>>, vector<8x10xf32>
    %cst = arith.constant 0.000000e+00 : f32
    %1 = vector.broadcast %cst : f32 to vector<8x10xf32>
    %2 = arith.subf %1, %0 : vector<8x10xf32>
    %c0_1 = arith.constant 0 : index
    %c0_2 = arith.constant 0 : index
    %3 = vector.load %arg4[%c0_1, %c0_2] : memref<8x10xf32, #tpu.memory_space<vmem>>, vector<8x10xf32>
    tpu.vector_store %arg4[%c0_1, %c0_2], %2 {strides = array<i32>} : memref<8x10xf32, #tpu.memory_space<vmem>>, vector<8x10xf32>,
    %c0_3 = arith.constant 0 : index
    %4 = memref.load %arg0[%c0_3] : memref<2xi32, #tpu.memory_space<smem>>
    %c1 = arith.constant 1 : index
    %5 = memref.load %arg0[%c1] : memref<2xi32, #tpu.memory_space<smem>>
    %c1_i32 = arith.constant 1 : i32
    %6 = arith.cmpi eq, %4, %c1_i32 : i32
    %7 = arith.extui %6 : i1 to i32
    %c0_i32 = arith.constant 0 : i32
    %8 = arith.cmpi ne, %7, %c0_i32 : i32
    scf.if %8 {
      %c0_4 = arith.constant 0 : index
      %c0_5 = arith.constant 0 : index
      %9 = vector.load %arg2[%c0_4, %c0_5] : memref<10x10xf32, #tpu.memory_space<vmem>>, vector<10x10xf32>
      %c0_6 = arith.constant 0 : index
      %c0_7 = arith.constant 0 : index
      %10 = vector.load %arg3[%c0_6, %c0_7] : memref<1x10xf32, #tpu.memory_space<vmem>>, vector<1x10xf32>
      %11 = vector.shape_cast %10 : vector<1x10xf32> to vector<1x10xf32>
      %12 = vector.broadcast %11 : vector<1x10xf32> to vector<8x10xf32>
      %c0_i32_8 = arith.constant 0 : i32
      %13 = arith.subi %5, %c0_i32_8 : i32
      %14 = arith.addi %c0_i32_8, %13 : i32
      %c1_i32_9 = arith.constant 1 : i32
      %15 = scf.for %arg5 = %c0_i32_8 to %14 step %c1_i32_9 iter_args(%arg6 = %0) -> (vector<8x10xf32>)  : i32 {
        %cst_12 = arith.constant dense<0.000000e+00> : vector<8x10xf32>
        %17 = tpu.matmul %arg6, %9, %cst_12 {dimension_numbers = #tpu.dot_dimension_numbers<[1], [1], [0], [0], [0, 0, 1, 0], [], []>} : vector<8x10xf32>, vector<10x10xf32>, vector<8x10xf32> -> vector<8x10xf32>
        %18 = arith.addf %17, %12 : vector<8x10xf32>
        scf.yield %18 : vector<8x10xf32>
      }
      %c0_10 = arith.constant 0 : index
      %c0_11 = arith.constant 0 : index
      %16 = vector.load %arg4[%c0_10, %c0_11] : memref<8x10xf32, #tpu.memory_space<vmem>>, vector<8x10xf32>
      tpu.vector_store %arg4[%c0_10, %c0_11], %15 {strides = array<i32>} : memref<8x10xf32, #tpu.memory_space<vmem>>, vector<8x10xf32>,
    } else {
    }
    return
  }
}

</mosaic_0001>

<llo_original>
// kernel: tpu_custom_call.1
$region0: #{tpu_custom_call.1}
  #allocation0 [shape = 'u32[]', space=smem, size = 0x4, offset = 0x4, fixed_abs, tag = 'smem constant byte address 0x4 - core index']
  #allocation1 [shape = 'u32[144,128]{1,0:T(1,128)}', space=vmem, size = 0x12000, scoped, tag = 'internal scratch']
  %s0 = inlined_call_operand.hbm [shape: s32[2], index: 0, kind: input, shape index: {}]
  %s1 = inlined_call_operand.hbm [shape: f32[8,10], index: 1, kind: input, shape index: {}]
  %s2 = inlined_call_operand.hbm [shape: f32[10,10], index: 2, kind: input, shape index: {}]
  %s3 = inlined_call_operand.vmem [shape: f32[1,10], index: 3, kind: input, shape index: {}]
  %s4 = inlined_call_operand.hbm [shape: f32[8,10], index: 4, kind: output, shape index: {}]
  %s5 = sld [smem:[#allocation0]]
  $region49: #{tpu_custom_call.1} parent=0
    _
  %s7 = ssub.s32 1, %s5
  %s8 = scalar_select 0, %s7, %s5
  $region1: #{tpu_custom_call.1} parent=0
    #allocation2 [shape = 'u8[512]{0}', space=smem, size = 0x200, scoped, tag = 'input window, operand 0, single buffered']
    #allocation3 [shape = 's32[1]{0}', space=sflag, size = 0x4, scoped, tag = 'scoped memory for tpu_custom_call.1']
    #allocation4 [shape = 's32[1]{0}', space=sflag, size = 0x4, scoped, tag = 'scoped memory for tpu_custom_call.1']
    #allocation5 [shape = 's32[1]{0}', space=sflag, size = 0x4, scoped, tag = 'scoped memory for tpu_custom_call.1']
    #allocation6 [shape = 'u8[4096]{0}', space=vmem, size = 0x1000, scoped, tag = 'input window, operand 1, single buffered']
    #allocation7 [shape = 'u8[8192]{0}', space=vmem, size = 0x2000, scoped, tag = 'input window, operand 2, single buffered']
    #allocation8 [shape = 's32[1]{0}', space=sflag, size = 0x4, scoped, tag = 'scoped memory for tpu_custom_call.1']
    #allocation9 [shape = 'u8[4096]{0}', space=vmem, size = 0x1000, scoped, tag = 'output window, operand 0, single buffered']
    %9 = vsyncpa [#allocation5], 0
    %10 = vsyncpa [#allocation3], 0
    %11 = vsyncpa [#allocation8], 0
    %12 = vsyncpa [#allocation4], 0
    // Predicated region
    $region2: #{tpu_custom_call.1} parent=1 // pred_check
      _
    $region3: #{tpu_custom_call.1} parent=1 // pred_check_branch
      %14 = sbr.rel (0) target = $region5
    $region4: #{tpu_custom_call.1} parent=1 // pred_region
      %s16 = ssub.s32 16, 16
      %17 = vsyncadd [#allocation5], %s16
      %20 = dma.hbm_to_smem %s0, 16, [#allocation2], [#allocation5]
    $region5: #{tpu_custom_call.1} parent=1 // pred_fallthru
      _
    // Predicated region
    $region6: #{tpu_custom_call.1} parent=1 // pred_check
      _
    $region7: #{tpu_custom_call.1} parent=1 // pred_check_branch
      %22 = sbr.rel (0) target = $region9
    $region8: #{tpu_custom_call.1} parent=1 // pred_region
      %s24 = ssub.s32 128, 128
      %25 = vsyncadd [#allocation3], %s24
      %s27 = sshll.u32 [#allocation6], 4
      %s28 = int_to_ptr.vmem [resolvable:$true] %s27
      %30 = dma.hbm_to_vmem [thread:$0]  %s1, 128, %s28, [#allocation3]
    $region9: #{tpu_custom_call.1} parent=1 // pred_fallthru
      _
    // Predicated region
    $region10: #{tpu_custom_call.1} parent=1 // pred_check
      _
    $region11: #{tpu_custom_call.1} parent=1 // pred_check_branch
      %32 = sbr.rel (0) target = $region13
    $region12: #{tpu_custom_call.1} parent=1 // pred_region
      %s34 = ssub.s32 256, 256
      %35 = vsyncadd [#allocation8], %s34
      %s36 = sshll.u32 [#allocation7], 4
      %s37 = int_to_ptr.vmem [resolvable:$true] %s36
      %42 = dma.hbm_to_vmem [thread:$0]  %s2, 256, %s37, [#allocation8], 128, 128, 8
    $region13: #{tpu_custom_call.1} parent=1 // pred_fallthru
      _
    // Predicated region
    $region14: #{tpu_custom_call.1} parent=1 // pred_check
      _
    $region15: #{tpu_custom_call.1} parent=1 // pred_check_branch
      %44 = sbr.rel (0) target = $region17
    $region16: #{tpu_custom_call.1} parent=1 // pred_region
      _
    $region17: #{tpu_custom_call.1} parent=1 // pred_fallthru
      _
    // Predicated region
    $region18: #{tpu_custom_call.1} parent=1 // pred_check
      _
    $region19: #{tpu_custom_call.1} parent=1 // pred_check_branch
      %46 = sbr.rel (0) target = $region21
    $region20: #{tpu_custom_call.1} parent=1 // pred_region
      %47 = dma.done [#allocation5], 16
    $region21: #{tpu_custom_call.1} parent=1 // pred_fallthru
      _
    // Predicated region
    $region22: #{tpu_custom_call.1} parent=1 // pred_check
      _
    $region23: #{tpu_custom_call.1} parent=1 // pred_check_branch
      %49 = sbr.rel (0) target = $region25
    $region24: #{tpu_custom_call.1} parent=1 // pred_region
      %50 = dma.done [#allocation3], 128
    $region25: #{tpu_custom_call.1} parent=1 // pred_fallthru
      _
    // Predicated region
    $region26: #{tpu_custom_call.1} parent=1 // pred_check
      _
    $region27: #{tpu_custom_call.1} parent=1 // pred_check_branch
      %52 = sbr.rel (0) target = $region29
    $region28: #{tpu_custom_call.1} parent=1 // pred_region
      %53 = dma.done [#allocation8], 256
    $region29: #{tpu_custom_call.1} parent=1 // pred_fallthru
      _
    %54 = sfence
    %v55 = vld [vmem:[#allocation6] sm:$0xff]
    %v56 = vsub.f32 0.0, %v55
    %vm57 = vcmask 80896
    %58 = vst.msk [vmem:[#allocation9] sm:$0xff] %vm57, %v56
    %s59 = sld [smem:[#allocation2]]
    %s60 = sld [smem:[#allocation2 + $0x1]]
    %p61 = scmp.eq.s32.totalorder %s59, 1
    // Predicated region
    $region30: #{tpu_custom_call.1} parent=1 // pred_check
      %p62 = pneg %p61
    $region31: #{tpu_custom_call.1} parent=1 // pred_check_branch
      %64 = sbr.rel (%p62) target = $region33
    $region32: #{tpu_custom_call.1} parent=1 // pred_region
      %v65 = vld [vmem:[#allocation7] sm:$0xff]
      %v66 = vld [vmem:[#allocation7 + $0x8] sm:$0x3]
      %v67 = vld [vmem:[%s3] sm:$0x1]
      %v69 = vlaneseq
      %v70 = vshrl.u32 %v69, 7
      %v71 = vsub.s32 0, %v70
      %v72 = vrot.slane %v67, %v71
      // While loop
      $region34: #{tpu_custom_call.1} parent=32 // loop_pre_header
        _
      $region35: #{tpu_custom_call.1} parent=32 // loop_header
        %s75 = sphi 0, %s77
        %p76 = scmp.ge.s32.totalorder %s75, %s60
        %v80 = vphi %v55, %v157
      $region36: #{tpu_custom_call.1} parent=32 // loop_header_branch
        %79 = sbr.rel (%p76) target = $region40
      $region37: #{tpu_custom_call.1} parent=32 // loop_body
        %v82 = vsel %vm57, %v80, 0
        %v85 = vsel %vm57, %v65, 0
        %v88 = vsel %vm57, %v66, 0
        %90 = vmatprep.subr.mxu0 0.0
        %91 = vmatpush1.xpose.msra.mxu0 %v85
        %92 = vmatprep.subr.mxu0 0.0
        %93 = vmatpush1.xpose.msra.mxu0 %v88
        %94 = vmatprep.subr.mxu0 0.0
        %95 = vmatpush1.xpose.msra.mxu0 0.0
        %96 = vmatprep.subr.mxu0 0.0
        %97 = vmatpush1.xpose.msra.mxu0 0.0
        %98 = vmatprep.subr.mxu0 0.0
        %99 = vmatpush1.xpose.msra.mxu0 0.0
        %100 = vmatprep.subr.mxu0 0.0
        %101 = vmatpush1.xpose.msra.mxu0 0.0
        %102 = vmatprep.subr.mxu0 0.0
        %103 = vmatpush1.xpose.msra.mxu0 0.0
        %104 = vmatprep.subr.mxu0 0.0
        %105 = vmatpush1.xpose.msra.mxu0 0.0
        %106 = vmatprep.subr.mxu0 0.0
        %107 = vmatpush1.xpose.msra.mxu0 0.0
        %108 = vmatprep.subr.mxu0 0.0
        %109 = vmatpush1.xpose.msra.mxu0 0.0
        %110 = vmatprep.subr.mxu0 0.0
        %111 = vmatpush1.xpose.msra.mxu0 0.0
        %112 = vmatprep.subr.mxu0 0.0
        %113 = vmatpush1.xpose.msra.mxu0 0.0
        %114 = vmatprep.subr.mxu0 0.0
        %115 = vmatpush1.xpose.msra.mxu0 0.0
        %116 = vmatprep.subr.mxu0 0.0
        %117 = vmatpush1.xpose.msra.mxu0 0.0
        %118 = vmatprep.subr.mxu0 0.0
        %119 = vmatpush1.xpose.msra.mxu0 0.0
        %120 = vmatprep.subr.mxu0 0.0
        %121 = vmatpush1.xpose.msra.mxu0 0.0
        %122 = vmatprep.subr.mxu0 0.0
        %123 = vmatpush1.xpose.msra.mxu0 0.0
        %124 = vmatprep.subr.mxu0 0.0
        %125 = vmatpush1.xpose.msra.mxu0 0.0
        %126 = vmatprep.subr.mxu0 0.0
        %127 = vmatpush1.xpose.msra.mxu0 0.0
        %128 = vmatprep.subr.mxu0 0.0
        %129 = vmatpush1.xpose.msra.mxu0 0.0
        %130 = vmatprep.subr.mxu0 0.0
        %131 = vmatpush1.xpose.msra.mxu0 0.0
        %132 = vmatprep.subr.mxu0 0.0
        %133 = vmatpush1.xpose.msra.mxu0 0.0
        %134 = vmatprep.subr.mxu0 0.0
        %135 = vmatpush1.xpose.msra.mxu0 0.0
        %136 = vmatprep.subr.mxu0 0.0
        %137 = vmatpush1.xpose.msra.mxu0 0.0
        %138 = vmatprep.subr.mxu0 0.0
        %139 = vmatpush1.xpose.msra.mxu0 0.0
        %140 = vmatprep.subr.mxu0 0.0
        %141 = vmatpush1.xpose.msra.mxu0 0.0
        %142 = vmatprep.subr.mxu0 0.0
        %143 = vmatpush1.xpose.msra.mxu0 0.0
        %144 = vmatprep.subr.mxu0 0.0
        %145 = vmatpush1.xpose.msra.mxu0 0.0
        %146 = vmatprep.subr.mxu0 0.0
        %147 = vmatpush1.xpose.msra.mxu0 0.0
        %148 = vmatprep.subr.mxu0 0.0
        %149 = vmatpush1.xpose.msra.mxu0 0.0
        %150 = vmatprep.subr.mxu0 0.0
        %151 = vmatpush1.xpose.msra.mxu0 0.0
        %152 = vmatprep.subr.mxu0 0.0
        %153 = vmatpush1.xpose.msra.mxu0 0.0
        %154 = vmatprep.mubr.f32.mxu0 0.0
        %155 = vmatmul.mubr.f32.gmra.mrb[0].mxu0 %v82
        %v156 = vpop.f32.mrb[0].mxu0
        %v157 = vadd.f32 %v72, %v156
        %v158 = vpop.f32.mrb[0].mxu0
        %159 = vdwg.mxu0
      $region38: #{tpu_custom_call.1} parent=32 // loop_footer
        %s77 = sadd.s32 %s75, 1
      $region39: #{tpu_custom_call.1} parent=32 // loop_footer_branch
        %74 = sbr.rel target = $region35
      $region40: #{tpu_custom_call.1} parent=32 // loop_exit
        _
      %160 = vst.msk [vmem:[#allocation9] sm:$0xff] %vm57, %v80
    $region33: #{tpu_custom_call.1} parent=1 // pred_fallthru
      _
    // Predicated region
    $region41: #{tpu_custom_call.1} parent=1 // pred_check
      _
    $region42: #{tpu_custom_call.1} parent=1 // pred_check_branch
      %162 = sbr.rel (0) target = $region44
    $region43: #{tpu_custom_call.1} parent=1 // pred_region
      %s164 = ssub.s32 128, 128
      %165 = vsyncadd [#allocation4], %s164
      %s167 = sshll.u32 [#allocation9], 4
      %s168 = int_to_ptr.vmem [resolvable:$true] %s167
      %170 = dma.vmem_to_hbm [thread:$0]  %s168, 128, %s4, [#allocation4]
    $region44: #{tpu_custom_call.1} parent=1 // pred_fallthru
      _
    // Predicated region
    $region45: #{tpu_custom_call.1} parent=1 // pred_check
      _
    $region46: #{tpu_custom_call.1} parent=1 // pred_check_branch
      %172 = sbr.rel (0) target = $region48
    $region47: #{tpu_custom_call.1} parent=1 // pred_region
      %173 = dma.done [#allocation4], 128
    $region48: #{tpu_custom_call.1} parent=1 // pred_fallthru
      _
    %174 = vsyncpa [#allocation3], 1
    %175 = vsyncpa [#allocation8], 1
    %176 = vsyncpa [#allocation4], 1
    %177 = vsyncpa [#allocation5], 1

</llo_original>
